<compile_context>
chip_gen: v7x
topology: tpu7x:2x2x1
jax: 0.10.0
libtpu: 0.0.40
codegen_flags: <defaults>
</compile_context>

<pallas_src>
import math

import jax
import jax.numpy as jnp
from jax.experimental import pallas as pl
from jax.experimental.pallas import tpu as pltpu


_GELU_C = math.sqrt(2.0 / math.pi)


def _ffn_kernel(x_ref, w1_ref, b1_ref, w2_ref, b2_ref, o_ref, acc_ref):
    # x_ref:  (tm, D)  activations (original dtype; cast to bf16 here)
    # w1_ref: (D, tn)  bf16 strip of W1
    # b1_ref: (1, tn)  f32 strip of b1
    # w2_ref: (tn, D)  bf16 strip of W2
    # b2_ref: (1, D)   f32 full b2
    # o_ref:  (tm, D)  output tile
    # acc_ref:(tm, D)  f32 accumulator scratch
    j = pl.program_id(1)

    @pl.when(j == 0)
    def _():
        # Fold b2 into the accumulator init (drops the add at writeback).
        acc_ref[...] = jnp.broadcast_to(b2_ref[...], acc_ref.shape)

    # linear1 strip: bf16 x bf16 -> f32 on the MXU.
    xb = x_ref[...].astype(jnp.bfloat16)
    h = jnp.dot(xb, w1_ref[...], preferred_element_type=jnp.float32)
    h = h + b1_ref[...]

    # tanh-approx GeLU (matches the module's GeLU); f32 elementwise, tanh -> EUP.
    h = 0.5 * h * (1.0 + jnp.tanh(_GELU_C * (h + 0.044715 * (h * h * h))))

    # linear2 strip: accumulate this hidden strip's contribution.
    acc_ref[...] += jnp.dot(h.astype(jnp.bfloat16), w2_ref[...],
                            preferred_element_type=jnp.float32)

    @pl.when(j == pl.num_programs(1) - 1)
    def _():
        o_ref[...] = acc_ref[...].astype(o_ref.dtype)


def _round_up(x, m):
    return ((x + m - 1) // m) * m


def _vmem_limit_bytes():
    """Physical VMEM minus headroom for compiler-internal temps/scratch."""
    cap = 64 * 1024 * 1024  # conservative fallback (v7x per-TC size)
    try:
        info = pltpu.get_tpu_info()
        cap = int(getattr(info, "vmem_capacity_bytes", cap)) or cap
    except Exception:  # pragma: no cover - off-TPU / older jax
        pass
    # v5e/v6e (128 MiB) -> 112 MiB; v7x (64 MiB) -> 48 MiB.
    return max(32 * 1024 * 1024, cap - 16 * 1024 * 1024)


def _pick_tiles(T, D, H, x_bytes, out_bytes, vmem_limit):
    """Pick (tm, tn): token-tile rows and hidden-strip width."""
    # Largest 256-aligned (preferred) divisor of H <= 1024; 128-aligned next;
    # full H only for tiny toy models.
    tn = next((c for c in (1024, 512, 256, 128) if H % c == 0), H)

    budget = int(vmem_limit * 0.85)

    def fits(tm_, tn_):
        dbl = 2  # double-buffered pipeline
        need = (tm_ * D * x_bytes * dbl        # x token tile
                + D * tn_ * 2 * dbl            # W1 strip (bf16)
                + tn_ * D * 2 * dbl            # W2 strip (bf16)
                + (tn_ + D) * 4 * dbl          # biases
                + tm_ * D * out_bytes * dbl    # output tile
                + tm_ * D * 4                  # f32 accumulator scratch
                + tm_ * tn_ * 4)               # GeLU intermediate (approx)
        return need <= budget

    # tm drives arithmetic intensity (~tm flops per streamed weight byte), so
    # start large and shrink the strip width first, tm second.
    tm = 1024
    while not fits(tm, tn) and tn > 256 and H % (tn // 2) == 0:
        tn //= 2
    while not fits(tm, tn) and tm > 256:
        tm //= 2
    while not fits(tm, tn) and tn > 128 and H % (tn // 2) == 0:
        tn //= 2
    while not fits(tm, tn) and tm > 8:
        tm //= 2

    # Small token counts: shrink tm to the work available, but keep >= 2 token
    # tiles when possible so the parallel axis can use both v7x TensorCores.
    if T <= tm:
        tm = max(8, _round_up(pl.cdiv(T, 2), 8)) if T > 8 else 8
    return tm, tn


def feed_forward(x, w1, b1, w2, b2):
    """Fused FeedForward: gelu_tanh(x @ w1 + b1) @ w2 + b2.

    x: (B, S, D).  Weights follow y = x @ W + b (already transposed vs torch's
    (out, in) storage).  Weights should be stored in bf16 to avoid a per-call
    cast pass; f32 weights are cast here as a fallback.
    """
    B, S, D = x.shape
    H = w1.shape[1]
    T = B * S
    out_dtype = x.dtype

    vmem_limit = _vmem_limit_bytes()
    tm, tn = _pick_tiles(T, D, H,
                         jnp.dtype(x.dtype).itemsize,
                         jnp.dtype(out_dtype).itemsize,
                         vmem_limit)

    # Free reshape (no copy); no padded copy of x is materialised — the ragged
    # final token tile is handled by Pallas partial blocks.
    x2 = x.reshape(T, D)

    w1b = w1 if w1.dtype == jnp.bfloat16 else w1.astype(jnp.bfloat16)
    w2b = w2 if w2.dtype == jnp.bfloat16 else w2.astype(jnp.bfloat16)
    b1_2d = b1.reshape(1, H).astype(jnp.float32)
    b2_2d = b2.reshape(1, D).astype(jnp.float32)

    grid = (pl.cdiv(T, tm), pl.cdiv(H, tn))

    # TODO(synk): if weight-strip DMA is still exposed at large tm (wall vs
    # compute), add pipeline_mode=pl.Buffered(3) on the W1/W2 specs where VMEM
    # permits.
    out = pl.pallas_call(
        _ffn_kernel,
        out_shape=jax.ShapeDtypeStruct((T, D), out_dtype),
        grid_spec=pltpu.PrefetchScalarGridSpec(
            num_scalar_prefetch=0,
            grid=grid,
            in_specs=[
                pl.BlockSpec((tm, D), lambda i, j: (i, 0)),   # x token tile
                pl.BlockSpec((D, tn), lambda i, j: (0, j)),   # W1 strip
                pl.BlockSpec((1, tn), lambda i, j: (0, j)),   # b1 strip
                pl.BlockSpec((tn, D), lambda i, j: (j, 0)),   # W2 strip
                pl.BlockSpec((1, D), lambda i, j: (0, 0)),    # b2
            ],
            out_specs=pl.BlockSpec((tm, D), lambda i, j: (i, 0)),
            scratch_shapes=[pltpu.VMEM((tm, D), jnp.float32)],
        ),
        compiler_params=pltpu.CompilerParams(
            dimension_semantics=("parallel", "arbitrary"),
            vmem_limit_bytes=vmem_limit,
        ),
    )(x2, w1b, b1_2d, w2b, b2_2d)

    return out.reshape(B, S, D)


def _torch_linear_init(key, in_features, out_features):
    """Deterministic init matching nn.Linear's uniform(-1/sqrt(in), 1/sqrt(in))."""
    kw, kb = jax.random.split(key)
    bound = 1.0 / math.sqrt(in_features)
    # torch stores weight as (out, in); we keep (in, out) so the kernel does x @ W.
    w = jax.random.uniform(kw, (in_features, out_features), jnp.float32, -bound, bound)
    b = jax.random.uniform(kb, (out_features,), jnp.float32, -bound, bound)
    return w, b


if __name__ == "__main__":
    B, S, D = 2, 8, 32          # batch=2, seq=8, n_dim=32 -> intermediate=128
    key = jax.random.PRNGKey(0)
    kx, k1, k2 = jax.random.split(key, 3)

    x = jax.random.normal(kx, (B, S, D), jnp.float32)
    w1_f32, b1 = _torch_linear_init(k1, D, 4 * D)
    w2_f32, b2 = _torch_linear_init(k2, 4 * D, D)

    # Store weights in bf16 once (hoisted cast — no per-call cast pass).
    w1 = w1_f32.astype(jnp.bfloat16)
    w2 = w2_f32.astype(jnp.bfloat16)

    y = feed_forward(x, w1, b1, w2, b2)
    y = jax.block_until_ready(y)

    # f32 reference (kernel uses bf16 MXU operands -> loosened tolerance).
    h_ref = x.reshape(-1, D) @ w1_f32 + b1
    c = math.sqrt(2.0 / math.pi)
    h_ref = 0.5 * h_ref * (1.0 + jnp.tanh(c * (h_ref + 0.044715 * h_ref ** 3)))
    y_ref = (h_ref @ w2_f32 + b2).reshape(B, S, D)
    assert jnp.allclose(y, y_ref, atol=5e-2, rtol=5e-2), "mismatch vs reference"

    print("KERNEL_OK")
</pallas_src>

<mosaic_0001>
module attributes {stable_mosaic.version = 11 : i64} {
  func.func @_ffn_kernel(%arg0: i32, %arg1: i32, %arg2: memref<8x32xf32, #tpu.memory_space<vmem>>, %arg3: memref<32x128xbf16, #tpu.memory_space<vmem>>, %arg4: memref<1x128xf32, #tpu.memory_space<vmem>>, %arg5: memref<128x32xbf16, #tpu.memory_space<vmem>>, %arg6: memref<1x32xf32, #tpu.memory_space<vmem>>, %arg7: memref<8x32xf32, #tpu.memory_space<vmem>>, %arg8: memref<8x32xf32, #tpu.memory_space<vmem>>) attributes {dimension_semantics = [#tpu.dimension_semantics<parallel>, #tpu.dimension_semantics<arbitrary>], iteration_bounds = array<i64: 2, 1>, scalar_prefetch = 0 : i64, scratch_operands = 1 : i64, tpu.core_type = #tpu.core_type<tc>, window_params = [{transform_indices = @transform_0, window_bounds = array<i64: 8, 32>}, {transform_indices = @transform_1, window_bounds = array<i64: 32, 128>}, {transform_indices = @transform_2, window_bounds = array<i64: 1, 128>}, {transform_indices = @transform_3, window_bounds = array<i64: 128, 32>}, {pipeline_mode = #tpu.pipeline_mode<synchronous>, transform_indices = @transform_4, window_bounds = array<i64: 1, 32>}, {transform_indices = @transform_5, window_bounds = array<i64: 8, 32>}]} {
    %c0_i32 = arith.constant 0 : i32
    %0 = arith.cmpi eq, %arg1, %c0_i32 : i32
    %1 = arith.extui %0 : i1 to i32
    %c0_i32_0 = arith.constant 0 : i32
    %2 = arith.cmpi ne, %1, %c0_i32_0 : i32
    scf.if %2 {
      %c0_19 = arith.constant 0 : index
      %c0_20 = arith.constant 0 : index
      %32 = vector.load %arg6[%c0_19, %c0_20] : memref<1x32xf32, #tpu.memory_space<vmem>>, vector<1x32xf32>
      %33 = vector.shape_cast %32 : vector<1x32xf32> to vector<1x32xf32>
      %34 = vector.broadcast %33 : vector<1x32xf32> to vector<8x32xf32>
      %c0_21 = arith.constant 0 : index
      %c0_22 = arith.constant 0 : index
      %35 = vector.load %arg8[%c0_21, %c0_22] : memref<8x32xf32, #tpu.memory_space<vmem>>, vector<8x32xf32>
      tpu.vector_store %arg8[%c0_21, %c0_22], %34 {strides = array<i32>} : memref<8x32xf32, #tpu.memory_space<vmem>>, vector<8x32xf32>,
    } else {
    }
    %c0 = arith.constant 0 : index
    %c0_1 = arith.constant 0 : index
    %3 = vector.load %arg2[%c0, %c0_1] : memref<8x32xf32, #tpu.memory_space<vmem>>, vector<8x32xf32>
    %4 = arith.truncf %3 : vector<8x32xf32> to vector<8x32xbf16>
    %c0_2 = arith.constant 0 : index
    %c0_3 = arith.constant 0 : index
    %5 = vector.load %arg3[%c0_2, %c0_3] : memref<32x128xbf16, #tpu.memory_space<vmem>>, vector<32x128xbf16>
    %cst = arith.constant dense<0.000000e+00> : vector<8x128xf32>
    %6 = tpu.matmul %4, %5, %cst {dimension_numbers = #tpu.dot_dimension_numbers<[1], [0], [0], [1], [0, 0, 1, 1], [], []>} : vector<8x32xbf16>, vector<32x128xbf16>, vector<8x128xf32> -> vector<8x128xf32>
    %c0_4 = arith.constant 0 : index
    %c0_5 = arith.constant 0 : index
    %7 = vector.load %arg4[%c0_4, %c0_5] : memref<1x128xf32, #tpu.memory_space<vmem>>, vector<1x128xf32>
    %8 = vector.broadcast %7 : vector<1x128xf32> to vector<8x128xf32>
    %9 = arith.addf %6, %8 : vector<8x128xf32>
    %cst_6 = arith.constant 5.000000e-01 : f32
    %10 = vector.broadcast %cst_6 : f32 to vector<8x128xf32>
    %11 = arith.mulf %10, %9 : vector<8x128xf32>
    %12 = arith.mulf %9, %9 : vector<8x128xf32>
    %13 = arith.mulf %12, %9 : vector<8x128xf32>
    %cst_7 = arith.constant 4.471500e-02 : f32
    %14 = vector.broadcast %cst_7 : f32 to vector<8x128xf32>
    %15 = arith.mulf %14, %13 : vector<8x128xf32>
    %16 = arith.addf %9, %15 : vector<8x128xf32>
    %cst_8 = arith.constant 0.797884583 : f32
    %17 = vector.broadcast %cst_8 : f32 to vector<8x128xf32>
    %18 = arith.mulf %17, %16 : vector<8x128xf32>
    %19 = math.tanh %18 : vector<8x128xf32>
    %cst_9 = arith.constant 1.000000e+00 : f32
    %20 = vector.broadcast %cst_9 : f32 to vector<8x128xf32>
    %21 = arith.addf %20, %19 : vector<8x128xf32>
    %22 = arith.mulf %11, %21 : vector<8x128xf32>
    %c0_10 = arith.constant 0 : index
    %c0_11 = arith.constant 0 : index
    %23 = vector.load %arg8[%c0_10, %c0_11] : memref<8x32xf32, #tpu.memory_space<vmem>>, vector<8x32xf32>
    %24 = arith.truncf %22 : vector<8x128xf32> to vector<8x128xbf16>
    %c0_12 = arith.constant 0 : index
    %c0_13 = arith.constant 0 : index
    %25 = vector.load %arg5[%c0_12, %c0_13] : memref<128x32xbf16, #tpu.memory_space<vmem>>, vector<128x32xbf16>
    %cst_14 = arith.constant dense<0.000000e+00> : vector<8x32xf32>
    %26 = tpu.matmul %24, %25, %cst_14 {dimension_numbers = #tpu.dot_dimension_numbers<[1], [0], [0], [1], [0, 0, 1, 1], [], []>} : vector<8x128xbf16>, vector<128x32xbf16>, vector<8x32xf32> -> vector<8x32xf32>
    %27 = arith.addf %23, %26 : vector<8x32xf32>
    %c0_15 = arith.constant 0 : index
    %c0_16 = arith.constant 0 : index
    %28 = vector.load %arg8[%c0_15, %c0_16] : memref<8x32xf32, #tpu.memory_space<vmem>>, vector<8x32xf32>
    tpu.vector_store %arg8[%c0_15, %c0_16], %27 {strides = array<i32>} : memref<8x32xf32, #tpu.memory_space<vmem>>, vector<8x32xf32>,
    %c0_i32_17 = arith.constant 0 : i32
    %29 = arith.cmpi eq, %arg1, %c0_i32_17 : i32
    %30 = arith.extui %29 : i1 to i32
    %c0_i32_18 = arith.constant 0 : i32
    %31 = arith.cmpi ne, %30, %c0_i32_18 : i32
    scf.if %31 {
      %c0_19 = arith.constant 0 : index
      %c0_20 = arith.constant 0 : index
      %32 = vector.load %arg8[%c0_19, %c0_20] : memref<8x32xf32, #tpu.memory_space<vmem>>, vector<8x32xf32>
      %c0_21 = arith.constant 0 : index
      %c0_22 = arith.constant 0 : index
      %33 = vector.load %arg7[%c0_21, %c0_22] : memref<8x32xf32, #tpu.memory_space<vmem>>, vector<8x32xf32>
      tpu.vector_store %arg7[%c0_21, %c0_22], %32 {strides = array<i32>} : memref<8x32xf32, #tpu.memory_space<vmem>>, vector<8x32xf32>,
    } else {
    }
    return
  }
  func.func @transform_0(%arg0: i32, %arg1: i32) -> (i32, i32) {
    %c0_i32 = arith.constant 0 : i32
    %c0_i32_0 = arith.constant 0 : i32
    return %arg0, %c0_i32 : i32, i32
  }
  func.func @transform_1(%arg0: i32, %arg1: i32) -> (i32, i32) {
    %c0_i32 = arith.constant 0 : i32
    %c0_i32_0 = arith.constant 0 : i32
    return %c0_i32, %arg1 : i32, i32
  }
  func.func @transform_2(%arg0: i32, %arg1: i32) -> (i32, i32) {
    %c0_i32 = arith.constant 0 : i32
    %c0_i32_0 = arith.constant 0 : i32
    return %c0_i32, %arg1 : i32, i32
  }
  func.func @transform_3(%arg0: i32, %arg1: i32) -> (i32, i32) {
    %c0_i32 = arith.constant 0 : i32
    %c0_i32_0 = arith.constant 0 : i32
    return %arg1, %c0_i32 : i32, i32
  }
  func.func @transform_4(%arg0: i32, %arg1: i32) -> (i32, i32) {
    %c0_i32 = arith.constant 0 : i32
    %c0_i32_0 = arith.constant 0 : i32
    %c0_i32_1 = arith.constant 0 : i32
    return %c0_i32, %c0_i32_0 : i32, i32
  }
  func.func @transform_5(%arg0: i32, %arg1: i32) -> (i32, i32) {
    %c0_i32 = arith.constant 0 : i32
    %c0_i32_0 = arith.constant 0 : i32
    return %arg0, %c0_i32 : i32, i32
  }
}

</mosaic_0001>

<llo_original>
// kernel: tpu_custom_call.1
$region0: #{tpu_custom_call.1}
  #allocation0 [shape = 'u32[]', space=smem, size = 0x4, offset = 0x4, fixed_abs, tag = 'smem constant byte address 0x4 - core index']
  #allocation1 [shape = 'u32[144,128]{1,0:T(1,128)}', space=vmem, size = 0x12000, scoped, tag = 'internal scratch']
  #allocation2 [shape = 'f32[8,32]{1,0:T(8,128)}', space=vmem, size = 0x1000, scoped, tag = 'scratch operand']
  %s0 = inlined_call_operand.vmem [shape: f32[16,32], index: 0, kind: input, shape index: {}]
  %s1 = inlined_call_operand.vmem [shape: bf16[32,128], index: 1, kind: input, shape index: {}]
  %s2 = inlined_call_operand.vmem [shape: f32[1,128], index: 2, kind: input, shape index: {}]
  %s3 = inlined_call_operand.vmem [shape: bf16[128,32], index: 3, kind: input, shape index: {}]
  %s4 = inlined_call_operand.vmem [shape: f32[1,32], index: 4, kind: input, shape index: {}]
  %s5 = inlined_call_operand.hbm [shape: f32[16,32], index: 5, kind: output, shape index: {}]
  %s6 = sld [smem:[#allocation0]]
  $region61: #{tpu_custom_call.1} parent=0
    _
  %s8 = ssub.s32 1, %s6
  %s9 = scalar_select 0, %s8, %s6
  $region1: #{tpu_custom_call.1} parent=0
    #allocation3 [shape = 'u8[8192]{0}', space=vmem, size = 0x2000, scoped, tag = 'output window, operand 0']
    #allocation4 [shape = 's32[2]{0}', space=sflag, size = 0x8, scoped, tag = 'scoped memory for tpu_custom_call.1']
    %10 = vsyncpa [#allocation4], 0
    %s11 = scalar_lea.sflag [#allocation4], 1
    %12 = vsyncpa %s11, 0
    loop: start=0, step=1, limit=4
    $region2: #{tpu_custom_call.1} parent=1 // loop_pre_header
      _
    $region3: #{tpu_custom_call.1} parent=1 // loop_header
      %s14 = sphi 0, %s18
      %p15 = scmp.ge.s32.totalorder %s14, 4
      %s21 = sphi 0, %s33
      %s22 = sphi 0, %s29
      %s23 = sphi 0, %s21
      %s24 = sphi 0, %s22
      %s25 = sphi 0, %s23
      %s26 = sphi 0, %s24
      %s36 = sphi 0, %s38
      %s39 = sphi 0, %s36
      %s40 = sphi 0, %s39
      %s56 = sphi 0, %s40
      %s62 = sphi 0, %s64
      %s65 = sphi 0, %s62
      %s66 = sphi 0, %s65
      %s82 = sphi 0, %s66
      %s88 = sphi 0, %s90
      %s91 = sphi 0, %s88
      %s92 = sphi 0, %s91
      %s108 = sphi 0, %s92
      %s114 = sphi 0, %s116
      %s117 = sphi 0, %s114
      %s118 = sphi 0, %s117
      %s134 = sphi 0, %s118
      %s138 = sphi 0, %s138
      %s140 = sphi 0, %s138
      %s141 = sphi 0, %s140
      %s155 = sphi 0, %s141
      %s161 = sphi 0, %s163
      %s164 = sphi 0, %s161
      %s165 = sphi 0, %s164
      %s181 = sphi 0, %s165
    $region4: #{tpu_custom_call.1} parent=1 // loop_header_branch
      %17 = sbr.rel (%p15) target = $region8
    $region5: #{tpu_custom_call.1} parent=1 // loop_body
      %s19 = ssub.s32 %s14, 1
      %s20 = ssub.s32 %s14, 2
      %s27 = sadd.s32 1, %s22
      %p28 = scmp.ge.s32.totalorder %s27, 1
      %s29 = scalar_select %p28, 0, %s27
      %s30 = sadd.s32 1, %s21
      %s31 = scalar_select %p28, %s30, %s21
      %p32 = scmp.ge.s32.totalorder %s31, 2
      %s33 = scalar_select %p32, 0, %s31
      %s34 = ssub.s32 %s21, %s33
      %p35 = scmp.eq.s32.totalorder %s34, 0
      %s37 = sadd.s32 %s36, 1
      %s38 = scalar_select %p35, %s36, %s37
      %p41 = pneg %p35
      %p42 = scmp.eq.s32.totalorder %s14, 1
      %p43 = por %p41, %p42
      %p44 = scmp.ne.s32.totalorder %s36, %s39
      %p45 = scmp.eq.s32.totalorder %s14, 0
      %p46 = por %p44, %p45
      %p47 = scmp.ne.s32.totalorder %s36, %s39
      %p48 = scmp.eq.s32.totalorder %s19, 1
      %p49 = por %p47, %p48
      %p50 = scmp.ne.s32.totalorder %s39, %s40
      %p51 = scmp.eq.s32.totalorder %s19, 0
      %p52 = por %p50, %p51
      %p53 = scmp.ne.s32.totalorder %s39, %s40
      %p54 = scmp.eq.s32.totalorder %s20, 1
      %p55 = por %p53, %p54
      %p57 = scmp.ne.s32.totalorder %s40, %s56
      %p58 = scmp.eq.s32.totalorder %s20, 0
      %p59 = por %p57, %p58
      %s60 = ssub.s32 %s22, %s29
      %p61 = scmp.eq.s32.totalorder %s60, 0
      %s63 = sadd.s32 %s62, 1
      %s64 = scalar_select %p61, %s62, %s63
      %p67 = pneg %p61
      %p68 = scmp.eq.s32.totalorder %s14, 1
      %p69 = por %p67, %p68
      %p70 = scmp.ne.s32.totalorder %s62, %s65
      %p71 = scmp.eq.s32.totalorder %s14, 0
      %p72 = por %p70, %p71
      %p73 = scmp.ne.s32.totalorder %s62, %s65
      %p74 = scmp.eq.s32.totalorder %s19, 1
      %p75 = por %p73, %p74
      %p76 = scmp.ne.s32.totalorder %s65, %s66
      %p77 = scmp.eq.s32.totalorder %s19, 0
      %p78 = por %p76, %p77
      %p79 = scmp.ne.s32.totalorder %s65, %s66
      %p80 = scmp.eq.s32.totalorder %s20, 1
      %p81 = por %p79, %p80
      %p83 = scmp.ne.s32.totalorder %s66, %s82
      %p84 = scmp.eq.s32.totalorder %s20, 0
      %p85 = por %p83, %p84
      %s86 = ssub.s32 %s22, %s29
      %p87 = scmp.eq.s32.totalorder %s86, 0
      %s89 = sadd.s32 %s88, 1
      %s90 = scalar_select %p87, %s88, %s89
      %p93 = pneg %p87
      %p94 = scmp.eq.s32.totalorder %s14, 1
      %p95 = por %p93, %p94
      %p96 = scmp.ne.s32.totalorder %s88, %s91
      %p97 = scmp.eq.s32.totalorder %s14, 0
      %p98 = por %p96, %p97
      %p99 = scmp.ne.s32.totalorder %s88, %s91
      %p100 = scmp.eq.s32.totalorder %s19, 1
      %p101 = por %p99, %p100
      %p102 = scmp.ne.s32.totalorder %s91, %s92
      %p103 = scmp.eq.s32.totalorder %s19, 0
      %p104 = por %p102, %p103
      %p105 = scmp.ne.s32.totalorder %s91, %s92
      %p106 = scmp.eq.s32.totalorder %s20, 1
      %p107 = por %p105, %p106
      %p109 = scmp.ne.s32.totalorder %s92, %s108
      %p110 = scmp.eq.s32.totalorder %s20, 0
      %p111 = por %p109, %p110
      %s112 = ssub.s32 %s22, %s29
      %p113 = scmp.eq.s32.totalorder %s112, 0
      %s115 = sadd.s32 %s114, 1
      %s116 = scalar_select %p113, %s114, %s115
      %p119 = pneg %p113
      %p120 = scmp.eq.s32.totalorder %s14, 1
      %p121 = por %p119, %p120
      %p122 = scmp.ne.s32.totalorder %s114, %s117
      %p123 = scmp.eq.s32.totalorder %s14, 0
      %p124 = por %p122, %p123
      %p125 = scmp.ne.s32.totalorder %s114, %s117
      %p126 = scmp.eq.s32.totalorder %s19, 1
      %p127 = por %p125, %p126
      %p128 = scmp.ne.s32.totalorder %s117, %s118
      %p129 = scmp.eq.s32.totalorder %s19, 0
      %p130 = por %p128, %p129
      %p131 = scmp.ne.s32.totalorder %s117, %s118
      %p132 = scmp.eq.s32.totalorder %s20, 1
      %p133 = por %p131, %p132
      %p135 = scmp.ne.s32.totalorder %s118, %s134
      %p136 = scmp.eq.s32.totalorder %s20, 0
      %p137 = por %p135, %p136
      %s139 = sadd.s32 %s138, 1
      %p142 = scmp.eq.s32.totalorder %s14, 1
      %p143 = scmp.ne.s32.totalorder %s138, %s140
      %p144 = scmp.eq.s32.totalorder %s14, 0
      %p145 = por %p143, %p144
      %p146 = scmp.ne.s32.totalorder %s138, %s140
      %p147 = scmp.eq.s32.totalorder %s19, 1
      %p148 = por %p146, %p147
      %p149 = scmp.ne.s32.totalorder %s140, %s141
      %p150 = scmp.eq.s32.totalorder %s19, 0
      %p151 = por %p149, %p150
      %p152 = scmp.ne.s32.totalorder %s140, %s141
      %p153 = scmp.eq.s32.totalorder %s20, 1
      %p154 = por %p152, %p153
      %p156 = scmp.ne.s32.totalorder %s141, %s155
      %p157 = scmp.eq.s32.totalorder %s20, 0
      %p158 = por %p156, %p157
      %s159 = ssub.s32 %s21, %s33
      %p160 = scmp.eq.s32.totalorder %s159, 0
      %s162 = sadd.s32 %s161, 1
      %s163 = scalar_select %p160, %s161, %s162
      %p166 = pneg %p160
      %p167 = scmp.eq.s32.totalorder %s14, 1
      %p168 = por %p166, %p167
      %p169 = scmp.ne.s32.totalorder %s161, %s164
      %p170 = scmp.eq.s32.totalorder %s14, 0
      %p171 = por %p169, %p170
      %p172 = scmp.ne.s32.totalorder %s161, %s164
      %p173 = scmp.eq.s32.totalorder %s19, 1
      %p174 = por %p172, %p173
      %p175 = scmp.ne.s32.totalorder %s164, %s165
      %p176 = scmp.eq.s32.totalorder %s19, 0
      %p177 = por %p175, %p176
      %p178 = scmp.ne.s32.totalorder %s164, %s165
      %p179 = scmp.eq.s32.totalorder %s20, 1
      %p180 = por %p178, %p179
      %p182 = scmp.ne.s32.totalorder %s165, %s181
      %p183 = scmp.eq.s32.totalorder %s20, 0
      %p184 = por %p182, %p183
      %p185 = scmp.le.s32.totalorder 1, %s14
      %p186 = scmp.lt.s32.totalorder %s14, 3
      %p187 = pnand %p185, %p186
      %p188 = pneg %p187
      // Predicated region
      $region9: #{tpu_custom_call.1} parent=5 // pred_check
        _
      $region10: #{tpu_custom_call.1} parent=5 // pred_check_branch
        %190 = sbr.rel (%p187) target = $region12
      $region11: #{tpu_custom_call.1} parent=5 // pred_region
        %s191 = ssub.s32 %s14, 1
        // Predicated region
        $region13: #{tpu_custom_call.1} parent=11 // pred_check
          %p192 = pneg %p78
        $region14: #{tpu_custom_call.1} parent=11 // pred_check_branch
          %194 = sbr.rel (%p192) target = $region16
        $region15: #{tpu_custom_call.1} parent=11 // pred_region
          %p195 = scmp.lt.s32.totalorder %s24, 0
          %s196 = scalar_select %p195, %s24, 0
          %s197 = smul.addr %s196, 4
          %s198 = scalar_lea.vmem %s1, %s197
        $region16: #{tpu_custom_call.1} parent=11 // pred_fallthru
          _
        // Predicated region
        $region17: #{tpu_custom_call.1} parent=11 // pred_check
          %p199 = pneg %p104
        $region18: #{tpu_custom_call.1} parent=11 // pred_check_branch
          %201 = sbr.rel (%p199) target = $region20
        $region19: #{tpu_custom_call.1} parent=11 // pred_region
          %p202 = scmp.lt.s32.totalorder %s24, 0
          %s203 = scalar_select %p202, %s24, 0
          %s204 = scalar_lea.vmem %s2, %s203
        $region20: #{tpu_custom_call.1} parent=11 // pred_fallthru
          _
        // Predicated region
        $region21: #{tpu_custom_call.1} parent=11 // pred_check
          %p205 = pneg %p130
        $region22: #{tpu_custom_call.1} parent=11 // pred_check_branch
          %207 = sbr.rel (%p205) target = $region24
        $region23: #{tpu_custom_call.1} parent=11 // pred_region
          %s208 = smul.u32 16, %s24
          %p209 = scmp.lt.s32.totalorder %s208, 15
          %s210 = scalar_select %p209, %s208, 15
          %s211 = smul.addr %s210, 4
          %s212 = scalar_lea.vmem %s3, %s211
          %s213 = smul.u32 16, %s24
        $region24: #{tpu_custom_call.1} parent=11 // pred_fallthru
          _
        // Predicated region
        $region25: #{tpu_custom_call.1} parent=11 // pred_check
          %p214 = pneg %p151
        $region26: #{tpu_custom_call.1} parent=11 // pred_check_branch
          %216 = sbr.rel (%p214) target = $region28
        $region27: #{tpu_custom_call.1} parent=11 // pred_region
          _
        $region28: #{tpu_custom_call.1} parent=11 // pred_fallthru
          _
      $region12: #{tpu_custom_call.1} parent=5 // pred_fallthru
        _
      %p217 = scmp.lt.s32.totalorder %s14, 2
      // Predicated region
      $region29: #{tpu_custom_call.1} parent=5 // pred_check
        %p218 = pneg %p217
      $region30: #{tpu_custom_call.1} parent=5 // pred_check_branch
        %220 = sbr.rel (%p218) target = $region32
      $region31: #{tpu_custom_call.1} parent=5 // pred_region
        // Predicated region
        $region33: #{tpu_custom_call.1} parent=31 // pred_check
          %p221 = pneg %p46
        $region34: #{tpu_custom_call.1} parent=31 // pred_check_branch
          %223 = sbr.rel (%p221) target = $region36
        $region35: #{tpu_custom_call.1} parent=31 // pred_region
          %p224 = scmp.lt.s32.totalorder %s21, 1
          %s225 = scalar_select %p224, %s21, 1
          %s226 = smul.addr %s225, 8
          %s227 = scalar_lea.vmem %s0, %s226
        $region36: #{tpu_custom_call.1} parent=31 // pred_fallthru
          _
      $region32: #{tpu_custom_call.1} parent=5 // pred_fallthru
        _
      %p228 = scmp.le.s32.totalorder 1, %s14
      %p229 = scmp.lt.s32.totalorder %s14, 3
      %p230 = pnand %p228, %p229
      %p231 = pneg %p230
      // Predicated region
      $region37: #{tpu_custom_call.1} parent=5 // pred_check
        _
      $region38: #{tpu_custom_call.1} parent=5 // pred_check_branch
        %233 = sbr.rel (%p230) target = $region40
      $region39: #{tpu_custom_call.1} parent=5 // pred_region
        %s234 = ssub.s32 %s14, 1
        %p235 = scmp.lt.s32.totalorder %s23, 1
        %s236 = scalar_select %p235, %s23, 1
        %s237 = smul.addr %s236, 8
        %s238 = scalar_lea.vmem %s0, %s237
        %p239 = pneg %p52
        %p240 = pneg %p49
        %p241 = scmp.lt.s32.totalorder %s24, 0
        %s242 = scalar_select %p241, %s24, 0
        %s243 = smul.addr %s242, 4
        %s244 = scalar_lea.vmem %s1, %s243
        %p245 = pneg %p78
        %p246 = pneg %p75
        %p247 = scmp.lt.s32.totalorder %s24, 0
        %s248 = scalar_select %p247, %s24, 0
        %s249 = scalar_lea.vmem %s2, %s248
        %p250 = pneg %p104
        %p251 = pneg %p101
        %s252 = smul.u32 16, %s24
        %p253 = scmp.lt.s32.totalorder %s252, 15
        %s254 = scalar_select %p253, %s252, 15
        %s255 = smul.addr %s254, 4
        %s256 = scalar_lea.vmem %s3, %s255
        %p257 = pneg %p130
        %p258 = pneg %p127
        %p259 = pneg %p151
        %p260 = pneg %p148
        %p261 = pneg %p177
        %p262 = pneg %p174
        %s263 = sand.u32 %s164, 1
        %s264 = scalar_lea.sflag [#allocation4], %s263
        %s265 = sand.u32 %s164, 1
        %s266 = smul.addr %s265, 8
        %s267 = scalar_lea.vmem [#allocation3], %s266
        %p268 = scmp.lt.s32.totalorder %s23, 1
        %s269 = scalar_select %p268, %s23, 1
        %s270 = smul.addr %s269, 8
        %s271 = scalar_lea.vmem %s0, %s270
        %p272 = scmp.lt.s32.totalorder %s24, 0
        %s273 = scalar_select %p272, %s24, 0
        %s274 = smul.addr %s273, 4
        %s275 = scalar_lea.vmem %s1, %s274
        %p276 = scmp.lt.s32.totalorder %s24, 0
        %s277 = scalar_select %p276, %s24, 0
        %s278 = scalar_lea.vmem %s2, %s277
        %s279 = smul.u32 16, %s24
        %p280 = scmp.lt.s32.totalorder %s279, 15
        %s281 = scalar_select %p280, %s279, 15
        %s282 = smul.addr %s281, 4
        %s283 = scalar_lea.vmem %s3, %s282
        %s284 = smul.u32 16, %s24
        %p286 = scmp.eq.s32.totalorder %s24, 0
        // Predicated region
        $region41: #{tpu_custom_call.1} parent=39 // pred_check
          %p287 = pneg %p286
        $region42: #{tpu_custom_call.1} parent=39 // pred_check_branch
          %289 = sbr.rel (%p287) target = $region44
        $region43: #{tpu_custom_call.1} parent=39 // pred_region
          %v290 = vld [vmem:[%s4] sm:$0x1]
          %v292 = vlaneseq
          %v293 = vshrl.u32 %v292, 7
          %v294 = vsub.s32 0, %v293
          %v295 = vrot.slane %v290, %v294
          %vm297 = vcmask 261120
          %298 = vst.msk [vmem:[#allocation2] sm:$0xff] %vm297, %v295
        $region44: #{tpu_custom_call.1} parent=39 // pred_fallthru
          _
        %v299 = vld [vmem:[%s271] sm:$0xff]
        %v300 = vpack.c.bf16 %v299, %v299
        %v301 = vld [vmem:[%s275] sm:$0xf]
        %v302 = vld [vmem:[%s275 + $0x4] sm:$0xf]
        %v303 = vld [vmem:[%s275 + $0x8] sm:$0xf]
        %v304 = vld [vmem:[%s275 + $0xc] sm:$0xf]
        %v305 = vld [vmem:[%s278] sm:$0x1]
        %v307 = vlaneseq
        %v308 = vshrl.u32 %v307, 7
        %v309 = vsub.s32 0, %v308
        %v310 = vrot.slane %v305, %v309
        %v316 = vunpack.c.l.b16 %v301
        %v317 = vunpack.c.l.b16 %v302
        %v318 = vunpack.c.l.b16 %v303
        %v319 = vunpack.c.l.b16 %v304
        %v320 = vpack.c.b16 %v317, %v316
        %v321 = vpack.c.b16 %v319, %v318
        %vm324 = vcmask 261120
        %v326 = vsel %vm324, %v300, 0
        %328 = vmatprep.subr.bf16.mxu0 0
        %329 = vmatpush1.bf16.msra.mxu0 %v320
        %330 = vmatprep.subr.bf16.mxu0 0
        %331 = vmatpush1.bf16.msra.mxu0 %v321
        %332 = vmatprep.subr.bf16.mxu0 0
        %333 = vmatpush1.bf16.msra.mxu0 0
        %334 = vmatprep.subr.bf16.mxu0 0
        %335 = vmatpush1.bf16.msra.mxu0 0
        %336 = vmatprep.subr.bf16.mxu0 0
        %337 = vmatpush1.bf16.msra.mxu0 0
        %338 = vmatprep.subr.bf16.mxu0 0
        %339 = vmatpush1.bf16.msra.mxu0 0
        %340 = vmatprep.subr.bf16.mxu0 0
        %341 = vmatpush1.bf16.msra.mxu0 0
        %342 = vmatprep.subr.bf16.mxu0 0
        %343 = vmatpush1.bf16.msra.mxu0 0
        %344 = vmatprep.subr.bf16.mxu0 0
        %345 = vmatpush1.bf16.msra.mxu0 0
        %346 = vmatprep.subr.bf16.mxu0 0
        %347 = vmatpush1.bf16.msra.mxu0 0
        %348 = vmatprep.subr.bf16.mxu0 0
        %349 = vmatpush1.bf16.msra.mxu0 0
        %350 = vmatprep.subr.bf16.mxu0 0
        %351 = vmatpush1.bf16.msra.mxu0 0
        %352 = vmatprep.subr.bf16.mxu0 0
        %353 = vmatpush1.bf16.msra.mxu0 0
        %354 = vmatprep.subr.bf16.mxu0 0
        %355 = vmatpush1.bf16.msra.mxu0 0
        %356 = vmatprep.subr.bf16.mxu0 0
        %357 = vmatpush1.bf16.msra.mxu0 0
        %358 = vmatprep.subr.bf16.mxu0 0
        %359 = vmatpush1.bf16.msra.mxu0 0
        %360 = vmatprep.mubr.bf16.mxu0 0
        %361 = vmatmul.mubr.bf16.gmra.mrb[0].mxu0 %v326
        %v362 = vpop.f32.mrb[0].mxu0
        %v363 = vadd.f32 %v310, %v362
        %v364 = vpop.f32.mrb[0].mxu0
        %v365 = vpop.f32.mrb[0].mxu0
        %v366 = vpop.f32.mrb[0].mxu0
        %367 = vdwg.mxu0
        %v368 = vmul.f32 %v363, 0.5
        %v369 = vmul.f32 %v363, %v363
        %v370 = vmul.f32 %v369, %v363
        %v371 = vmul.f32 %v370, 0.044715
        %v372 = vadd.f32 %v363, %v371
        %v373 = vmul.f32 %v372, 0.7978846
        %v374 = vtanh.pop %v373
        %v375 = vadd.f32 %v374, 1.0
        %v376 = vmul.f32 %v368, %v375
        %v377 = vld [vmem:[#allocation2] sm:$0xff]
        %v378 = vpack.c.bf16 %v376, %v376
        %v379 = vld [vmem:[%s283] sm:$0xf]
        %v380 = vld [vmem:[%s283 + $0x4] sm:$0xf]
        %v381 = vld [vmem:[%s283 + $0x8] sm:$0xf]
        %v382 = vld [vmem:[%s283 + $0xc] sm:$0xf]
        %v383 = vld [vmem:[%s283 + $0x10] sm:$0xf]
        %v384 = vld [vmem:[%s283 + $0x14] sm:$0xf]
        %v385 = vld [vmem:[%s283 + $0x18] sm:$0xf]
        %v386 = vld [vmem:[%s283 + $0x1c] sm:$0xf]
        %v387 = vld [vmem:[%s283 + $0x20] sm:$0xf]
        %v388 = vld [vmem:[%s283 + $0x24] sm:$0xf]
        %v389 = vld [vmem:[%s283 + $0x28] sm:$0xf]
        %v390 = vld [vmem:[%s283 + $0x2c] sm:$0xf]
        %v391 = vld [vmem:[%s283 + $0x30] sm:$0xf]
        %v392 = vld [vmem:[%s283 + $0x34] sm:$0xf]
        %v393 = vld [vmem:[%s283 + $0x38] sm:$0xf]
        %v394 = vld [vmem:[%s283 + $0x3c] sm:$0xf]
        %v411 = vunpack.c.l.b16 %v379
        %v412 = vunpack.c.l.b16 %v380
        %v413 = vunpack.c.l.b16 %v381
        %v414 = vunpack.c.l.b16 %v382
        %v415 = vunpack.c.l.b16 %v383
        %v416 = vunpack.c.l.b16 %v384
        %v417 = vunpack.c.l.b16 %v385
        %v418 = vunpack.c.l.b16 %v386
        %v419 = vunpack.c.l.b16 %v387
        %v420 = vunpack.c.l.b16 %v388
        %v421 = vunpack.c.l.b16 %v389
        %v422 = vunpack.c.l.b16 %v390
        %v423 = vunpack.c.l.b16 %v391
        %v424 = vunpack.c.l.b16 %v392
        %v425 = vunpack.c.l.b16 %v393
        %v426 = vunpack.c.l.b16 %v394
        %v427 = vpack.c.b16 %v412, %v411
        %v428 = vpack.c.b16 %v414, %v413
        %v429 = vpack.c.b16 %v416, %v415
        %v430 = vpack.c.b16 %v418, %v417
        %v431 = vpack.c.b16 %v420, %v419
        %v432 = vpack.c.b16 %v422, %v421
        %v433 = vpack.c.b16 %v424, %v423
        %v434 = vpack.c.b16 %v426, %v425
        %443 = vmatprep.subr.bf16.mxu0 0
        %444 = vmatpush1.bf16.msra.mxu0 %v427
        %445 = vmatprep.subr.bf16.mxu0 0
        %446 = vmatpush1.bf16.msra.mxu0 %v428
        %447 = vmatprep.subr.bf16.mxu0 0
        %448 = vmatpush1.bf16.msra.mxu0 %v429
        %449 = vmatprep.subr.bf16.mxu0 0
        %450 = vmatpush1.bf16.msra.mxu0 %v430
        %451 = vmatprep.subr.bf16.mxu0 0
        %452 = vmatpush1.bf16.msra.mxu0 %v431
        %453 = vmatprep.subr.bf16.mxu0 0
        %454 = vmatpush1.bf16.msra.mxu0 %v432
        %455 = vmatprep.subr.bf16.mxu0 0
        %456 = vmatpush1.bf16.msra.mxu0 %v433
        %457 = vmatprep.subr.bf16.mxu0 0
        %458 = vmatpush1.bf16.msra.mxu0 %v434
        %459 = vmatprep.subr.bf16.mxu0 0
        %460 = vmatpush1.bf16.msra.mxu0 0
        %461 = vmatprep.subr.bf16.mxu0 0
        %462 = vmatpush1.bf16.msra.mxu0 0
        %463 = vmatprep.subr.bf16.mxu0 0
        %464 = vmatpush1.bf16.msra.mxu0 0
        %465 = vmatprep.subr.bf16.mxu0 0
        %466 = vmatpush1.bf16.msra.mxu0 0
        %467 = vmatprep.subr.bf16.mxu0 0
        %468 = vmatpush1.bf16.msra.mxu0 0
        %469 = vmatprep.subr.bf16.mxu0 0
        %470 = vmatpush1.bf16.msra.mxu0 0
        %471 = vmatprep.subr.bf16.mxu0 0
        %472 = vmatpush1.bf16.msra.mxu0 0
        %473 = vmatprep.subr.bf16.mxu0 0
        %474 = vmatpush1.bf16.msra.mxu0 0
        %475 = vmatprep.mubr.bf16.mxu0 0
        %476 = vmatmul.mubr.bf16.gmra.mrb[0].mxu0 %v378
        %v477 = vpop.f32.mrb[0].mxu0
        %v478 = vadd.f32 0.0, %v477
        %v479 = vpop.f32.mrb[0].mxu0
        %v480 = vpop.f32.mrb[0].mxu0
        %v481 = vpop.f32.mrb[0].mxu0
        %482 = vdwg.mxu0
        %v483 = vadd.f32 %v377, %v478
        %484 = vst.msk [vmem:[#allocation2] sm:$0xff] %vm324, %v483
        // Predicated region
        $region45: #{tpu_custom_call.1} parent=39 // pred_check
          %p485 = pneg %p286
        $region46: #{tpu_custom_call.1} parent=39 // pred_check_branch
          %487 = sbr.rel (%p485) target = $region48
        $region47: #{tpu_custom_call.1} parent=39 // pred_region
          %v488 = vld [vmem:[#allocation2] sm:$0xff]
          %489 = vst.msk [vmem:[%s267] sm:$0xff] %vm324, %v488
        $region48: #{tpu_custom_call.1} parent=39 // pred_fallthru
          _
        %s490 = sand.u32 %s164, 1
        %s491 = scalar_lea.sflag [#allocation4], %s490
        %s492 = sand.u32 %s164, 1
        %s493 = smul.addr %s492, 8
        %s494 = scalar_lea.vmem [#allocation3], %s493
        // Predicated region
        $region49: #{tpu_custom_call.1} parent=39 // pred_check
          %p495 = pneg %p174
        $region50: #{tpu_custom_call.1} parent=39 // pred_check_branch
          %497 = sbr.rel (%p495) target = $region52
        $region51: #{tpu_custom_call.1} parent=39 // pred_region
          %s499 = ssub.s32 128, 128
          %500 = vsyncadd %s491, %s499
          %s501 = smul.addr %s23, 128
          %s502 = scalar_lea.hbm %s5, %s501
          %s504 = sshll.u32 %s494, 4
          %s505 = int_to_ptr.vmem [resolvable:$true] %s504
          %507 = dma.vmem_to_hbm [thread:$0]  %s505, 128, %s502, %s491
        $region52: #{tpu_custom_call.1} parent=39 // pred_fallthru
          _
      $region40: #{tpu_custom_call.1} parent=5 // pred_fallthru
        _
      %p508 = scmp.le.s32.totalorder 2, %s14
      // Predicated region
      $region53: #{tpu_custom_call.1} parent=5 // pred_check
        %p509 = pneg %p508
      $region54: #{tpu_custom_call.1} parent=5 // pred_check_branch
        %511 = sbr.rel (%p509) target = $region56
      $region55: #{tpu_custom_call.1} parent=5 // pred_region
        %s512 = ssub.s32 %s14, 2
        // Predicated region
        $region57: #{tpu_custom_call.1} parent=55 // pred_check
          %p513 = pneg %p180
        $region58: #{tpu_custom_call.1} parent=55 // pred_check_branch
          %515 = sbr.rel (%p513) target = $region60
        $region59: #{tpu_custom_call.1} parent=55 // pred_region
          %s516 = sand.u32 %s165, 1
          %s517 = scalar_lea.sflag [#allocation4], %s516
          %s518 = sand.u32 %s165, 1
          %s519 = smul.addr %s518, 8
          %s520 = scalar_lea.vmem [#allocation3], %s519
          %521 = dma.done %s517, 128
        $region60: #{tpu_custom_call.1} parent=55 // pred_fallthru
          _
      $region56: #{tpu_custom_call.1} parent=5 // pred_fallthru
        _
    $region6: #{tpu_custom_call.1} parent=1 // loop_footer
      %s18 = sadd.s32 1, %s14
    $region7: #{tpu_custom_call.1} parent=1 // loop_footer_branch
      %13 = sbr.rel target = $region3
    $region8: #{tpu_custom_call.1} parent=1 // loop_exit
      _
    %522 = vsyncpa [#allocation4], 1
    %s523 = scalar_lea.sflag [#allocation4], 1
    %524 = vsyncpa %s523, 1

</llo_original>
